<compile_context>
chip_gen: v7x
topology: tpu7x:2x2x1
jax: 0.10.0
libtpu: 0.0.40
codegen_flags: <defaults>
</compile_context>

<pallas_src>
import jax
import jax.numpy as jnp
from jax.experimental import pallas as pl
from jax.experimental.pallas import tpu as pltpu


def _pick_rows_per_block(n_rows: int, row_bytes: int,
                         target_bytes: int = 2 << 20) -> int:
    """Largest divisor of n_rows whose block stays near `target_bytes`."""
    r = max(1, min(n_rows, target_bytes // max(row_bytes, 1)))
    while n_rows % r:          # round down to a divisor -> no partial blocks
        r -= 1
    # Keep >= 2 grid steps when possible: lets the 'parallel' axis be split
    # across the 2 TensorCores on v7x and gives the pipeline something to
    # overlap (harmless on v5e/v6e).
    if r == n_rows and n_rows % 2 == 0 and n_rows > 1:
        r = n_rows // 2
    return r


def _temporal_shuffle_kernel(perm_ref, x_ref, o_ref):
    # perm_ref : SMEM (T,) int32   -- scalar-prefetched permutation
    # x_ref    : VMEM (R, T, HW)   -- contiguous slab of R (b, c) rows
    # o_ref    : VMEM (R, T, HW)
    T = x_ref.shape[1]
    for t in range(T):                          # static unroll, T is small
        src = perm_ref[t]                       # dynamic source time index
        o_ref[:, pl.ds(t, 1), :] = x_ref[:, pl.ds(src, 1), :]


def temporal_shuffle(x: jax.Array, perm: jax.Array) -> jax.Array:
    """x: [B, C, T, H, W], perm: [T] int -> x[:, :, perm, :, :]."""
    B, C, T, H, W = x.shape
    HW = H * W
    n_rows = B * C
    # TODO(synk): if H*W is far from a multiple of 128 (e.g. 7*7=49), pad the
    # lane axis in the wrapper for full 128-lane DMA utilization.
    x2 = x.reshape(n_rows, T, HW)               # free: same row-major layout
    perm = perm.astype(jnp.int32)

    itemsize = jnp.dtype(x.dtype).itemsize
    R = _pick_rows_per_block(n_rows, T * HW * itemsize)
    grid = (n_rows // R,)
    block_bytes = R * T * HW * itemsize
    # in + out blocks, double-buffered, plus headroom; safe on v5e (16 MiB
    # default scoped), v6e (32/128 MiB) and v7x (32/64 MiB).
    vmem_limit = int(min(64 << 20, max(16 << 20, 6 * block_bytes)))

    out = pl.pallas_call(
        _temporal_shuffle_kernel,
        out_shape=jax.ShapeDtypeStruct((n_rows, T, HW), x.dtype),
        grid_spec=pltpu.PrefetchScalarGridSpec(
            num_scalar_prefetch=1,
            grid=grid,
            in_specs=[pl.BlockSpec((R, T, HW), lambda r, perm_ref: (r, 0, 0))],
            out_specs=pl.BlockSpec((R, T, HW), lambda r, perm_ref: (r, 0, 0)),
        ),
        compiler_params=pltpu.CompilerParams(
            dimension_semantics=("parallel",),
            vmem_limit_bytes=vmem_limit,
        ),
    )(perm, x2)

    return out.reshape(B, C, T, H, W)


def temporal_shuffle_random(x: jax.Array, key: jax.Array):
    """Mirrors the PyTorch forward: fresh random permutation of the T axis."""
    T = x.shape[2]
    perm = jax.random.permutation(key, T)
    return temporal_shuffle(x, perm), perm


if __name__ == "__main__":
    key = jax.random.PRNGKey(0)
    kx, kp = jax.random.split(key)
    B, C, T, H, W = 2, 4, 8, 16, 16
    x = jax.random.normal(kx, (B, C, T, H, W), dtype=jnp.float32)

    y, perm = temporal_shuffle_random(x, kp)
    y = jax.block_until_ready(y)

    # Reference: plain JAX gather with the same permutation (exact match).
    y_ref = x[:, :, perm, :, :]
    assert y.shape == (B, C, T, H, W), y.shape
    assert bool(jnp.array_equal(jnp.sort(perm), jnp.arange(T))), "not a permutation"
    assert bool(jnp.array_equal(y, y_ref)), "mismatch vs reference gather"

    print("KERNEL_OK")
</pallas_src>

<mosaic_0001>
module attributes {stable_mosaic.version = 11 : i64} {
  func.func @_temporal_shuffle_kernel(%arg0: i32, %arg1: memref<8xi32, #tpu.memory_space<smem>>, %arg2: memref<4x8x256xf32, #tpu.memory_space<vmem>>, %arg3: memref<4x8x256xf32, #tpu.memory_space<vmem>>) attributes {dimension_semantics = [#tpu.dimension_semantics<parallel>], iteration_bounds = array<i64: 2>, scalar_prefetch = 1 : i64, scratch_operands = 0 : i64, tpu.core_type = #tpu.core_type<tc>, window_params = [{transform_indices = @transform_0, window_bounds = array<i64: 4, 8, 256>}, {transform_indices = @transform_1, window_bounds = array<i64: 4, 8, 256>}]} {
    %c0 = arith.constant 0 : index
    %0 = memref.load %arg1[%c0] : memref<8xi32, #tpu.memory_space<smem>>
    %c0_0 = arith.constant 0 : index
    %1 = arith.index_cast %0 : i32 to index
    %c0_1 = arith.constant 0 : index
    %2 = vector.load %arg2[%c0_0, %1, %c0_1] : memref<4x8x256xf32, #tpu.memory_space<vmem>>, vector<4x1x256xf32>
    %c0_2 = arith.constant 0 : index
    %c0_3 = arith.constant 0 : index
    %c0_4 = arith.constant 0 : index
    %3 = vector.load %arg3[%c0_2, %c0_3, %c0_4] : memref<4x8x256xf32, #tpu.memory_space<vmem>>, vector<4x1x256xf32>
    tpu.vector_store %arg3[%c0_2, %c0_3, %c0_4], %2 {strides = array<i32>} : memref<4x8x256xf32, #tpu.memory_space<vmem>>, vector<4x1x256xf32>,
    %c1 = arith.constant 1 : index
    %4 = memref.load %arg1[%c1] : memref<8xi32, #tpu.memory_space<smem>>
    %c0_5 = arith.constant 0 : index
    %5 = arith.index_cast %4 : i32 to index
    %c0_6 = arith.constant 0 : index
    %6 = vector.load %arg2[%c0_5, %5, %c0_6] : memref<4x8x256xf32, #tpu.memory_space<vmem>>, vector<4x1x256xf32>
    %c0_7 = arith.constant 0 : index
    %c1_8 = arith.constant 1 : index
    %c0_9 = arith.constant 0 : index
    %7 = vector.load %arg3[%c0_7, %c1_8, %c0_9] : memref<4x8x256xf32, #tpu.memory_space<vmem>>, vector<4x1x256xf32>
    tpu.vector_store %arg3[%c0_7, %c1_8, %c0_9], %6 {strides = array<i32>} : memref<4x8x256xf32, #tpu.memory_space<vmem>>, vector<4x1x256xf32>,
    %c2 = arith.constant 2 : index
    %8 = memref.load %arg1[%c2] : memref<8xi32, #tpu.memory_space<smem>>
    %c0_10 = arith.constant 0 : index
    %9 = arith.index_cast %8 : i32 to index
    %c0_11 = arith.constant 0 : index
    %10 = vector.load %arg2[%c0_10, %9, %c0_11] : memref<4x8x256xf32, #tpu.memory_space<vmem>>, vector<4x1x256xf32>
    %c0_12 = arith.constant 0 : index
    %c2_13 = arith.constant 2 : index
    %c0_14 = arith.constant 0 : index
    %11 = vector.load %arg3[%c0_12, %c2_13, %c0_14] : memref<4x8x256xf32, #tpu.memory_space<vmem>>, vector<4x1x256xf32>
    tpu.vector_store %arg3[%c0_12, %c2_13, %c0_14], %10 {strides = array<i32>} : memref<4x8x256xf32, #tpu.memory_space<vmem>>, vector<4x1x256xf32>,
    %c3 = arith.constant 3 : index
    %12 = memref.load %arg1[%c3] : memref<8xi32, #tpu.memory_space<smem>>
    %c0_15 = arith.constant 0 : index
    %13 = arith.index_cast %12 : i32 to index
    %c0_16 = arith.constant 0 : index
    %14 = vector.load %arg2[%c0_15, %13, %c0_16] : memref<4x8x256xf32, #tpu.memory_space<vmem>>, vector<4x1x256xf32>
    %c0_17 = arith.constant 0 : index
    %c3_18 = arith.constant 3 : index
    %c0_19 = arith.constant 0 : index
    %15 = vector.load %arg3[%c0_17, %c3_18, %c0_19] : memref<4x8x256xf32, #tpu.memory_space<vmem>>, vector<4x1x256xf32>
    tpu.vector_store %arg3[%c0_17, %c3_18, %c0_19], %14 {strides = array<i32>} : memref<4x8x256xf32, #tpu.memory_space<vmem>>, vector<4x1x256xf32>,
    %c4 = arith.constant 4 : index
    %16 = memref.load %arg1[%c4] : memref<8xi32, #tpu.memory_space<smem>>
    %c0_20 = arith.constant 0 : index
    %17 = arith.index_cast %16 : i32 to index
    %c0_21 = arith.constant 0 : index
    %18 = vector.load %arg2[%c0_20, %17, %c0_21] : memref<4x8x256xf32, #tpu.memory_space<vmem>>, vector<4x1x256xf32>
    %c0_22 = arith.constant 0 : index
    %c4_23 = arith.constant 4 : index
    %c0_24 = arith.constant 0 : index
    %19 = vector.load %arg3[%c0_22, %c4_23, %c0_24] : memref<4x8x256xf32, #tpu.memory_space<vmem>>, vector<4x1x256xf32>
    tpu.vector_store %arg3[%c0_22, %c4_23, %c0_24], %18 {strides = array<i32>} : memref<4x8x256xf32, #tpu.memory_space<vmem>>, vector<4x1x256xf32>,
    %c5 = arith.constant 5 : index
    %20 = memref.load %arg1[%c5] : memref<8xi32, #tpu.memory_space<smem>>
    %c0_25 = arith.constant 0 : index
    %21 = arith.index_cast %20 : i32 to index
    %c0_26 = arith.constant 0 : index
    %22 = vector.load %arg2[%c0_25, %21, %c0_26] : memref<4x8x256xf32, #tpu.memory_space<vmem>>, vector<4x1x256xf32>
    %c0_27 = arith.constant 0 : index
    %c5_28 = arith.constant 5 : index
    %c0_29 = arith.constant 0 : index
    %23 = vector.load %arg3[%c0_27, %c5_28, %c0_29] : memref<4x8x256xf32, #tpu.memory_space<vmem>>, vector<4x1x256xf32>
    tpu.vector_store %arg3[%c0_27, %c5_28, %c0_29], %22 {strides = array<i32>} : memref<4x8x256xf32, #tpu.memory_space<vmem>>, vector<4x1x256xf32>,
    %c6 = arith.constant 6 : index
    %24 = memref.load %arg1[%c6] : memref<8xi32, #tpu.memory_space<smem>>
    %c0_30 = arith.constant 0 : index
    %25 = arith.index_cast %24 : i32 to index
    %c0_31 = arith.constant 0 : index
    %26 = vector.load %arg2[%c0_30, %25, %c0_31] : memref<4x8x256xf32, #tpu.memory_space<vmem>>, vector<4x1x256xf32>
    %c0_32 = arith.constant 0 : index
    %c6_33 = arith.constant 6 : index
    %c0_34 = arith.constant 0 : index
    %27 = vector.load %arg3[%c0_32, %c6_33, %c0_34] : memref<4x8x256xf32, #tpu.memory_space<vmem>>, vector<4x1x256xf32>
    tpu.vector_store %arg3[%c0_32, %c6_33, %c0_34], %26 {strides = array<i32>} : memref<4x8x256xf32, #tpu.memory_space<vmem>>, vector<4x1x256xf32>,
    %c7 = arith.constant 7 : index
    %28 = memref.load %arg1[%c7] : memref<8xi32, #tpu.memory_space<smem>>
    %c0_35 = arith.constant 0 : index
    %29 = arith.index_cast %28 : i32 to index
    %c0_36 = arith.constant 0 : index
    %30 = vector.load %arg2[%c0_35, %29, %c0_36] : memref<4x8x256xf32, #tpu.memory_space<vmem>>, vector<4x1x256xf32>
    %c0_37 = arith.constant 0 : index
    %c7_38 = arith.constant 7 : index
    %c0_39 = arith.constant 0 : index
    %31 = vector.load %arg3[%c0_37, %c7_38, %c0_39] : memref<4x8x256xf32, #tpu.memory_space<vmem>>, vector<4x1x256xf32>
    tpu.vector_store %arg3[%c0_37, %c7_38, %c0_39], %30 {strides = array<i32>} : memref<4x8x256xf32, #tpu.memory_space<vmem>>, vector<4x1x256xf32>,
    return
  }
  func.func @transform_0(%arg0: i32, %arg1: memref<8xi32, #tpu.memory_space<smem>>) -> (i32, i32, i32) {
    %c0_i32 = arith.constant 0 : i32
    %c0_i32_0 = arith.constant 0 : i32
    %c0_i32_1 = arith.constant 0 : i32
    return %arg0, %c0_i32, %c0_i32_0 : i32, i32, i32
  }
  func.func @transform_1(%arg0: i32, %arg1: memref<8xi32, #tpu.memory_space<smem>>) -> (i32, i32, i32) {
    %c0_i32 = arith.constant 0 : i32
    %c0_i32_0 = arith.constant 0 : i32
    %c0_i32_1 = arith.constant 0 : i32
    return %arg0, %c0_i32, %c0_i32_0 : i32, i32, i32
  }
}

</mosaic_0001>

<llo_original>
// kernel: tpu_custom_call.1
$region0: #{tpu_custom_call.1}
  #allocation0 [shape = 'u32[]', space=smem, size = 0x4, offset = 0x4, fixed_abs, tag = 'smem constant byte address 0x4 - core index']
  #allocation1 [shape = 'u32[144,128]{1,0:T(1,128)}', space=vmem, size = 0x12000, scoped, tag = 'internal scratch']
  #allocation2 [shape = 's32[1]{0}', space=sflag, size = 0x4, scoped, tag = 'scoped memory for tpu_custom_call.1']
  #allocation3 [shape = 'u8[512]{0}', space=smem, size = 0x200, scoped, tag = 'prefetched SMEM operand 0']
  %s0 = inlined_call_operand.hbm [shape: s32[8], index: 0, kind: input, shape index: {}]
  %s1 = inlined_call_operand.hbm [shape: f32[8,8,256], index: 1, kind: input, shape index: {}]
  %s2 = inlined_call_operand.hbm [shape: f32[8,8,256], index: 2, kind: output, shape index: {}]
  %s3 = sld [smem:[#allocation0]]
  $region41: #{tpu_custom_call.1} parent=0
    _
  %s5 = ssub.s32 1, %s3
  %s6 = scalar_select 0, %s5, %s3
  %8 = dma.hbm_to_smem %s0, 16, [#allocation3], [#allocation2]
  %9 = dma.done [#allocation2], 16
  %10 = sfence
  $region1: #{tpu_custom_call.1} parent=0
    #allocation4 [shape = 'u8[65536]{0}', space=vmem, size = 0x10000, scoped, tag = 'input window, operand 1']
    #allocation5 [shape = 's32[2]{0}', space=sflag, size = 0x8, scoped, tag = 'scoped memory for tpu_custom_call.1']
    #allocation6 [shape = 's32[2]{0}', space=sflag, size = 0x8, scoped, tag = 'scoped memory for tpu_custom_call.1']
    #allocation7 [shape = 'u8[65536]{0}', space=vmem, size = 0x10000, scoped, tag = 'output window, operand 0']
    %11 = vsyncpa [#allocation5], 0
    %s12 = scalar_lea.sflag [#allocation5], 1
    %13 = vsyncpa %s12, 0
    %14 = vsyncpa [#allocation6], 0
    %s15 = scalar_lea.sflag [#allocation6], 1
    %16 = vsyncpa %s15, 0
    loop: start=0, step=1, limit=4
    $region2: #{tpu_custom_call.1} parent=1 // loop_pre_header
      _
    $region3: #{tpu_custom_call.1} parent=1 // loop_header
      %s18 = sphi 0, %s22
      %p19 = scmp.ge.s32.totalorder %s18, 4
      %s28 = sphi 0, %s30
      %s31 = sphi 0, %s28
      %s32 = sphi 0, %s31
      %s48 = sphi 0, %s32
      %s54 = sphi 0, %s56
      %s57 = sphi 0, %s54
      %s58 = sphi 0, %s57
      %s74 = sphi 0, %s58
    $region4: #{tpu_custom_call.1} parent=1 // loop_header_branch
      %21 = sbr.rel (%p19) target = $region8
    $region5: #{tpu_custom_call.1} parent=1 // loop_body
      %s23 = ssub.s32 %s18, 1
      %s24 = ssub.s32 %s18, 2
      %s25 = sadd.s32 %s18, 1
      %s26 = ssub.s32 %s18, %s25
      %p27 = scmp.eq.s32.totalorder %s26, 0
      %s29 = sadd.s32 %s28, 1
      %s30 = scalar_select %p27, %s28, %s29
      %p33 = pneg %p27
      %p34 = scmp.eq.s32.totalorder %s18, 1
      %p35 = por %p33, %p34
      %p36 = scmp.ne.s32.totalorder %s28, %s31
      %p37 = scmp.eq.s32.totalorder %s18, 0
      %p38 = por %p36, %p37
      %p39 = scmp.ne.s32.totalorder %s28, %s31
      %p40 = scmp.eq.s32.totalorder %s23, 1
      %p41 = por %p39, %p40
      %p42 = scmp.ne.s32.totalorder %s31, %s32
      %p43 = scmp.eq.s32.totalorder %s23, 0
      %p44 = por %p42, %p43
      %p45 = scmp.ne.s32.totalorder %s31, %s32
      %p46 = scmp.eq.s32.totalorder %s24, 1
      %p47 = por %p45, %p46
      %p49 = scmp.ne.s32.totalorder %s32, %s48
      %p50 = scmp.eq.s32.totalorder %s24, 0
      %p51 = por %p49, %p50
      %s52 = ssub.s32 %s18, %s25
      %p53 = scmp.eq.s32.totalorder %s52, 0
      %s55 = sadd.s32 %s54, 1
      %s56 = scalar_select %p53, %s54, %s55
      %p59 = pneg %p53
      %p60 = scmp.eq.s32.totalorder %s18, 1
      %p61 = por %p59, %p60
      %p62 = scmp.ne.s32.totalorder %s54, %s57
      %p63 = scmp.eq.s32.totalorder %s18, 0
      %p64 = por %p62, %p63
      %p65 = scmp.ne.s32.totalorder %s54, %s57
      %p66 = scmp.eq.s32.totalorder %s23, 1
      %p67 = por %p65, %p66
      %p68 = scmp.ne.s32.totalorder %s57, %s58
      %p69 = scmp.eq.s32.totalorder %s23, 0
      %p70 = por %p68, %p69
      %p71 = scmp.ne.s32.totalorder %s57, %s58
      %p72 = scmp.eq.s32.totalorder %s24, 1
      %p73 = por %p71, %p72
      %p75 = scmp.ne.s32.totalorder %s58, %s74
      %p76 = scmp.eq.s32.totalorder %s24, 0
      %p77 = por %p75, %p76
      %p78 = scmp.le.s32.totalorder 1, %s18
      %p79 = scmp.lt.s32.totalorder %s18, 3
      %p80 = pnand %p78, %p79
      %p81 = pneg %p80
      // Predicated region
      $region9: #{tpu_custom_call.1} parent=5 // pred_check
        _
      $region10: #{tpu_custom_call.1} parent=5 // pred_check_branch
        %83 = sbr.rel (%p80) target = $region12
      $region11: #{tpu_custom_call.1} parent=5 // pred_region
        %s84 = ssub.s32 %s18, 1
      $region12: #{tpu_custom_call.1} parent=5 // pred_fallthru
        _
      %p85 = scmp.lt.s32.totalorder %s18, 2
      // Predicated region
      $region13: #{tpu_custom_call.1} parent=5 // pred_check
        %p86 = pneg %p85
      $region14: #{tpu_custom_call.1} parent=5 // pred_check_branch
        %88 = sbr.rel (%p86) target = $region16
      $region15: #{tpu_custom_call.1} parent=5 // pred_region
        // Predicated region
        $region17: #{tpu_custom_call.1} parent=15 // pred_check
          %p89 = pneg %p38
        $region18: #{tpu_custom_call.1} parent=15 // pred_check_branch
          %91 = sbr.rel (%p89) target = $region20
        $region19: #{tpu_custom_call.1} parent=15 // pred_region
          %s92 = sand.u32 %s28, 1
          %s93 = scalar_lea.sflag [#allocation5], %s92
          %s94 = sand.u32 %s28, 1
          %s95 = smul.addr %s94, 64
          %s96 = scalar_lea.vmem [#allocation4], %s95
          %s97 = smul.u32 4, %s18
          %s99 = ssub.s32 1024, 1024
          %100 = vsyncadd %s93, %s99
          %s101 = smul.addr %s97, 2
          %s102 = smul.addr %s101, 128
          %s103 = scalar_lea.hbm %s1, %s102
          %s104 = sshll.u32 %s96, 4
          %s105 = int_to_ptr.vmem [resolvable:$true] %s104
          %110 = dma.hbm_to_vmem [thread:$0]  %s103, 1024, %s105, %s93, 256, 256, 16
        $region20: #{tpu_custom_call.1} parent=15 // pred_fallthru
          _
      $region16: #{tpu_custom_call.1} parent=5 // pred_fallthru
        _
      %p111 = scmp.le.s32.totalorder 1, %s18
      %p112 = scmp.lt.s32.totalorder %s18, 3
      %p113 = pnand %p111, %p112
      %p114 = pneg %p113
      // Predicated region
      $region21: #{tpu_custom_call.1} parent=5 // pred_check
        _
      $region22: #{tpu_custom_call.1} parent=5 // pred_check_branch
        %116 = sbr.rel (%p113) target = $region24
      $region23: #{tpu_custom_call.1} parent=5 // pred_region
        %s117 = ssub.s32 %s18, 1
        %s118 = sand.u32 %s31, 1
        %s119 = scalar_lea.sflag [#allocation5], %s118
        %s120 = sand.u32 %s31, 1
        %s121 = smul.addr %s120, 64
        %s122 = scalar_lea.vmem [#allocation4], %s121
        // Predicated region
        $region25: #{tpu_custom_call.1} parent=23 // pred_check
          %p123 = pneg %p44
        $region26: #{tpu_custom_call.1} parent=23 // pred_check_branch
          %125 = sbr.rel (%p123) target = $region28
        $region27: #{tpu_custom_call.1} parent=23 // pred_region
          %126 = dma.done %s119, 1024
        $region28: #{tpu_custom_call.1} parent=23 // pred_fallthru
          _
        %s127 = sand.u32 %s31, 1
        %s128 = scalar_lea.sflag [#allocation5], %s127
        %s129 = sand.u32 %s31, 1
        %s130 = smul.addr %s129, 64
        %s131 = scalar_lea.vmem [#allocation4], %s130
        %p132 = pneg %p44
        %p133 = pneg %p41
        %p134 = pneg %p70
        %p135 = pneg %p67
        %s136 = sand.u32 %s57, 1
        %s137 = scalar_lea.sflag [#allocation6], %s136
        %s138 = sand.u32 %s57, 1
        %s139 = smul.addr %s138, 64
        %s140 = scalar_lea.vmem [#allocation7], %s139
        %s141 = smul.u32 4, %s23
        %s142 = smul.u32 4, %s23
        %s143 = sld [smem:[#allocation3]]
        %s144 = sshra.s32 %s143, 3
        %s145 = sand.u32 %s143, 7
        %s146 = sshra.s32 %s143, 3
        %s147 = sand.u32 %s143, 7
        %s148 = smul.u32 %s144, 2
        %s149 = smul.u32 %s148, 8
        %s150 = sadd.s32 %s149, %s147
        %s151 = scalar_lea.vmem %s122, %s150 [#allocation4]
        %v152 = vld [vmem:[%s151] ss:$8 sm:$0x3]
        %s153 = sadd.s32 16, %s150
        %s154 = scalar_lea.vmem %s122, %s153 [#allocation4]
        %v155 = vld [vmem:[%s154] ss:$8 sm:$0x3]
        %s156 = sadd.s32 32, %s150
        %s157 = scalar_lea.vmem %s122, %s156 [#allocation4]
        %v158 = vld [vmem:[%s157] ss:$8 sm:$0x3]
        %s159 = sadd.s32 48, %s150
        %s160 = scalar_lea.vmem %s122, %s159 [#allocation4]
        %v161 = vld [vmem:[%s160] ss:$8 sm:$0x3]
        %v162 = vlaneseq
        %vm163 = vcmp.ge.s32.totalorder %v162, 0
        %vm164 = vcmp.lt.s32.totalorder %v162, 256
        %vm165 = vmand %vm163, %vm164
        %166 = vst.msk [vmem:[%s140] ss:$8 sm:$0x3] %vm165, %v152
        %167 = vst.msk [vmem:[%s140] ss:$8 sm:$0x0] %vm165, %v152
        %s168 = scalar_lea.vmem %s140, 16 [#allocation7]
        %169 = vst.msk [vmem:[%s168] ss:$8 sm:$0x3] %vm165, %v155
        %170 = vst.msk [vmem:[%s168] ss:$8 sm:$0x0] %vm165, %v155
        %s171 = scalar_lea.vmem %s140, 32 [#allocation7]
        %172 = vst.msk [vmem:[%s171] ss:$8 sm:$0x3] %vm165, %v158
        %173 = vst.msk [vmem:[%s171] ss:$8 sm:$0x0] %vm165, %v158
        %s174 = scalar_lea.vmem %s140, 48 [#allocation7]
        %175 = vst.msk [vmem:[%s174] ss:$8 sm:$0x3] %vm165, %v161
        %176 = vst.msk [vmem:[%s174] ss:$8 sm:$0x0] %vm165, %v161
        %s177 = sld [smem:[#allocation3 + $0x1]]
        %s178 = sshra.s32 %s177, 3
        %s179 = sand.u32 %s177, 7
        %s180 = sshra.s32 %s177, 3
        %s181 = sand.u32 %s177, 7
        %s182 = smul.u32 %s178, 2
        %s183 = smul.u32 %s182, 8
        %s184 = sadd.s32 %s183, %s181
        %s185 = scalar_lea.vmem %s122, %s184 [#allocation4]
        %v186 = vld [vmem:[%s185] ss:$8 sm:$0x3]
        %s187 = sadd.s32 16, %s184
        %s188 = scalar_lea.vmem %s122, %s187 [#allocation4]
        %v189 = vld [vmem:[%s188] ss:$8 sm:$0x3]
        %s190 = sadd.s32 32, %s184
        %s191 = scalar_lea.vmem %s122, %s190 [#allocation4]
        %v192 = vld [vmem:[%s191] ss:$8 sm:$0x3]
        %s193 = sadd.s32 48, %s184
        %s194 = scalar_lea.vmem %s122, %s193 [#allocation4]
        %v195 = vld [vmem:[%s194] ss:$8 sm:$0x3]
        %s196 = scalar_lea.vmem %s140, 1 [#allocation7]
        %197 = vst.msk [vmem:[%s196] ss:$8 sm:$0x3] %vm165, %v186
        %198 = vst.msk [vmem:[%s196] ss:$8 sm:$0x0] %vm165, %v186
        %s199 = scalar_lea.vmem %s140, 17 [#allocation7]
        %200 = vst.msk [vmem:[%s199] ss:$8 sm:$0x3] %vm165, %v189
        %201 = vst.msk [vmem:[%s199] ss:$8 sm:$0x0] %vm165, %v189
        %s202 = scalar_lea.vmem %s140, 33 [#allocation7]
        %203 = vst.msk [vmem:[%s202] ss:$8 sm:$0x3] %vm165, %v192
        %204 = vst.msk [vmem:[%s202] ss:$8 sm:$0x0] %vm165, %v192
        %s205 = scalar_lea.vmem %s140, 49 [#allocation7]
        %206 = vst.msk [vmem:[%s205] ss:$8 sm:$0x3] %vm165, %v195
        %207 = vst.msk [vmem:[%s205] ss:$8 sm:$0x0] %vm165, %v195
        %s208 = sld [smem:[#allocation3 + $0x2]]
        %s209 = sshra.s32 %s208, 3
        %s210 = sand.u32 %s208, 7
        %s211 = sshra.s32 %s208, 3
        %s212 = sand.u32 %s208, 7
        %s213 = smul.u32 %s209, 2
        %s214 = smul.u32 %s213, 8
        %s215 = sadd.s32 %s214, %s212
        %s216 = scalar_lea.vmem %s122, %s215 [#allocation4]
        %v217 = vld [vmem:[%s216] ss:$8 sm:$0x3]
        %s218 = sadd.s32 16, %s215
        %s219 = scalar_lea.vmem %s122, %s218 [#allocation4]
        %v220 = vld [vmem:[%s219] ss:$8 sm:$0x3]
        %s221 = sadd.s32 32, %s215
        %s222 = scalar_lea.vmem %s122, %s221 [#allocation4]
        %v223 = vld [vmem:[%s222] ss:$8 sm:$0x3]
        %s224 = sadd.s32 48, %s215
        %s225 = scalar_lea.vmem %s122, %s224 [#allocation4]
        %v226 = vld [vmem:[%s225] ss:$8 sm:$0x3]
        %s227 = scalar_lea.vmem %s140, 2 [#allocation7]
        %228 = vst.msk [vmem:[%s227] ss:$8 sm:$0x3] %vm165, %v217
        %229 = vst.msk [vmem:[%s227] ss:$8 sm:$0x0] %vm165, %v217
        %s230 = scalar_lea.vmem %s140, 18 [#allocation7]
        %231 = vst.msk [vmem:[%s230] ss:$8 sm:$0x3] %vm165, %v220
        %232 = vst.msk [vmem:[%s230] ss:$8 sm:$0x0] %vm165, %v220
        %s233 = scalar_lea.vmem %s140, 34 [#allocation7]
        %234 = vst.msk [vmem:[%s233] ss:$8 sm:$0x3] %vm165, %v223
        %235 = vst.msk [vmem:[%s233] ss:$8 sm:$0x0] %vm165, %v223
        %s236 = scalar_lea.vmem %s140, 50 [#allocation7]
        %237 = vst.msk [vmem:[%s236] ss:$8 sm:$0x3] %vm165, %v226
        %238 = vst.msk [vmem:[%s236] ss:$8 sm:$0x0] %vm165, %v226
        %s239 = sld [smem:[#allocation3 + $0x3]]
        %s240 = sshra.s32 %s239, 3
        %s241 = sand.u32 %s239, 7
        %s242 = sshra.s32 %s239, 3
        %s243 = sand.u32 %s239, 7
        %s244 = smul.u32 %s240, 2
        %s245 = smul.u32 %s244, 8
        %s246 = sadd.s32 %s245, %s243
        %s247 = scalar_lea.vmem %s122, %s246 [#allocation4]
        %v248 = vld [vmem:[%s247] ss:$8 sm:$0x3]
        %s249 = sadd.s32 16, %s246
        %s250 = scalar_lea.vmem %s122, %s249 [#allocation4]
        %v251 = vld [vmem:[%s250] ss:$8 sm:$0x3]
        %s252 = sadd.s32 32, %s246
        %s253 = scalar_lea.vmem %s122, %s252 [#allocation4]
        %v254 = vld [vmem:[%s253] ss:$8 sm:$0x3]
        %s255 = sadd.s32 48, %s246
        %s256 = scalar_lea.vmem %s122, %s255 [#allocation4]
        %v257 = vld [vmem:[%s256] ss:$8 sm:$0x3]
        %s258 = scalar_lea.vmem %s140, 3 [#allocation7]
        %259 = vst.msk [vmem:[%s258] ss:$8 sm:$0x3] %vm165, %v248
        %260 = vst.msk [vmem:[%s258] ss:$8 sm:$0x0] %vm165, %v248
        %s261 = scalar_lea.vmem %s140, 19 [#allocation7]
        %262 = vst.msk [vmem:[%s261] ss:$8 sm:$0x3] %vm165, %v251
        %263 = vst.msk [vmem:[%s261] ss:$8 sm:$0x0] %vm165, %v251
        %s264 = scalar_lea.vmem %s140, 35 [#allocation7]
        %265 = vst.msk [vmem:[%s264] ss:$8 sm:$0x3] %vm165, %v254
        %266 = vst.msk [vmem:[%s264] ss:$8 sm:$0x0] %vm165, %v254
        %s267 = scalar_lea.vmem %s140, 51 [#allocation7]
        %268 = vst.msk [vmem:[%s267] ss:$8 sm:$0x3] %vm165, %v257
        %269 = vst.msk [vmem:[%s267] ss:$8 sm:$0x0] %vm165, %v257
        %s270 = sld [smem:[#allocation3 + $0x4]]
        %s271 = sshra.s32 %s270, 3
        %s272 = sand.u32 %s270, 7
        %s273 = sshra.s32 %s270, 3
        %s274 = sand.u32 %s270, 7
        %s275 = smul.u32 %s271, 2
        %s276 = smul.u32 %s275, 8
        %s277 = sadd.s32 %s276, %s274
        %s278 = scalar_lea.vmem %s122, %s277 [#allocation4]
        %v279 = vld [vmem:[%s278] ss:$8 sm:$0x3]
        %s280 = sadd.s32 16, %s277
        %s281 = scalar_lea.vmem %s122, %s280 [#allocation4]
        %v282 = vld [vmem:[%s281] ss:$8 sm:$0x3]
        %s283 = sadd.s32 32, %s277
        %s284 = scalar_lea.vmem %s122, %s283 [#allocation4]
        %v285 = vld [vmem:[%s284] ss:$8 sm:$0x3]
        %s286 = sadd.s32 48, %s277
        %s287 = scalar_lea.vmem %s122, %s286 [#allocation4]
        %v288 = vld [vmem:[%s287] ss:$8 sm:$0x3]
        %s289 = scalar_lea.vmem %s140, 4 [#allocation7]
        %290 = vst.msk [vmem:[%s289] ss:$8 sm:$0x3] %vm165, %v279
        %291 = vst.msk [vmem:[%s289] ss:$8 sm:$0x0] %vm165, %v279
        %s292 = scalar_lea.vmem %s140, 20 [#allocation7]
        %293 = vst.msk [vmem:[%s292] ss:$8 sm:$0x3] %vm165, %v282
        %294 = vst.msk [vmem:[%s292] ss:$8 sm:$0x0] %vm165, %v282
        %s295 = scalar_lea.vmem %s140, 36 [#allocation7]
        %296 = vst.msk [vmem:[%s295] ss:$8 sm:$0x3] %vm165, %v285
        %297 = vst.msk [vmem:[%s295] ss:$8 sm:$0x0] %vm165, %v285
        %s298 = scalar_lea.vmem %s140, 52 [#allocation7]
        %299 = vst.msk [vmem:[%s298] ss:$8 sm:$0x3] %vm165, %v288
        %300 = vst.msk [vmem:[%s298] ss:$8 sm:$0x0] %vm165, %v288
        %s301 = sld [smem:[#allocation3 + $0x5]]
        %s302 = sshra.s32 %s301, 3
        %s303 = sand.u32 %s301, 7
        %s304 = sshra.s32 %s301, 3
        %s305 = sand.u32 %s301, 7
        %s306 = smul.u32 %s302, 2
        %s307 = smul.u32 %s306, 8
        %s308 = sadd.s32 %s307, %s305
        %s309 = scalar_lea.vmem %s122, %s308 [#allocation4]
        %v310 = vld [vmem:[%s309] ss:$8 sm:$0x3]
        %s311 = sadd.s32 16, %s308
        %s312 = scalar_lea.vmem %s122, %s311 [#allocation4]
        %v313 = vld [vmem:[%s312] ss:$8 sm:$0x3]
        %s314 = sadd.s32 32, %s308
        %s315 = scalar_lea.vmem %s122, %s314 [#allocation4]
        %v316 = vld [vmem:[%s315] ss:$8 sm:$0x3]
        %s317 = sadd.s32 48, %s308
        %s318 = scalar_lea.vmem %s122, %s317 [#allocation4]
        %v319 = vld [vmem:[%s318] ss:$8 sm:$0x3]
        %s320 = scalar_lea.vmem %s140, 5 [#allocation7]
        %321 = vst.msk [vmem:[%s320] ss:$8 sm:$0x3] %vm165, %v310
        %322 = vst.msk [vmem:[%s320] ss:$8 sm:$0x0] %vm165, %v310
        %s323 = scalar_lea.vmem %s140, 21 [#allocation7]
        %324 = vst.msk [vmem:[%s323] ss:$8 sm:$0x3] %vm165, %v313
        %325 = vst.msk [vmem:[%s323] ss:$8 sm:$0x0] %vm165, %v313
        %s326 = scalar_lea.vmem %s140, 37 [#allocation7]
        %327 = vst.msk [vmem:[%s326] ss:$8 sm:$0x3] %vm165, %v316
        %328 = vst.msk [vmem:[%s326] ss:$8 sm:$0x0] %vm165, %v316
        %s329 = scalar_lea.vmem %s140, 53 [#allocation7]
        %330 = vst.msk [vmem:[%s329] ss:$8 sm:$0x3] %vm165, %v319
        %331 = vst.msk [vmem:[%s329] ss:$8 sm:$0x0] %vm165, %v319
        %s332 = sld [smem:[#allocation3 + $0x6]]
        %s333 = sshra.s32 %s332, 3
        %s334 = sand.u32 %s332, 7
        %s335 = sshra.s32 %s332, 3
        %s336 = sand.u32 %s332, 7
        %s337 = smul.u32 %s333, 2
        %s338 = smul.u32 %s337, 8
        %s339 = sadd.s32 %s338, %s336
        %s340 = scalar_lea.vmem %s122, %s339 [#allocation4]
        %v341 = vld [vmem:[%s340] ss:$8 sm:$0x3]
        %s342 = sadd.s32 16, %s339
        %s343 = scalar_lea.vmem %s122, %s342 [#allocation4]
        %v344 = vld [vmem:[%s343] ss:$8 sm:$0x3]
        %s345 = sadd.s32 32, %s339
        %s346 = scalar_lea.vmem %s122, %s345 [#allocation4]
        %v347 = vld [vmem:[%s346] ss:$8 sm:$0x3]
        %s348 = sadd.s32 48, %s339
        %s349 = scalar_lea.vmem %s122, %s348 [#allocation4]
        %v350 = vld [vmem:[%s349] ss:$8 sm:$0x3]
        %s351 = scalar_lea.vmem %s140, 6 [#allocation7]
        %352 = vst.msk [vmem:[%s351] ss:$8 sm:$0x3] %vm165, %v341
        %353 = vst.msk [vmem:[%s351] ss:$8 sm:$0x0] %vm165, %v341
        %s354 = scalar_lea.vmem %s140, 22 [#allocation7]
        %355 = vst.msk [vmem:[%s354] ss:$8 sm:$0x3] %vm165, %v344
        %356 = vst.msk [vmem:[%s354] ss:$8 sm:$0x0] %vm165, %v344
        %s357 = scalar_lea.vmem %s140, 38 [#allocation7]
        %358 = vst.msk [vmem:[%s357] ss:$8 sm:$0x3] %vm165, %v347
        %359 = vst.msk [vmem:[%s357] ss:$8 sm:$0x0] %vm165, %v347
        %s360 = scalar_lea.vmem %s140, 54 [#allocation7]
        %361 = vst.msk [vmem:[%s360] ss:$8 sm:$0x3] %vm165, %v350
        %362 = vst.msk [vmem:[%s360] ss:$8 sm:$0x0] %vm165, %v350
        %s363 = sld [smem:[#allocation3 + $0x7]]
        %s364 = sshra.s32 %s363, 3
        %s365 = sand.u32 %s363, 7
        %s366 = sshra.s32 %s363, 3
        %s367 = sand.u32 %s363, 7
        %s368 = smul.u32 %s364, 2
        %s369 = smul.u32 %s368, 8
        %s370 = sadd.s32 %s369, %s367
        %s371 = scalar_lea.vmem %s122, %s370 [#allocation4]
        %v372 = vld [vmem:[%s371] ss:$8 sm:$0x3]
        %s373 = sadd.s32 16, %s370
        %s374 = scalar_lea.vmem %s122, %s373 [#allocation4]
        %v375 = vld [vmem:[%s374] ss:$8 sm:$0x3]
        %s376 = sadd.s32 32, %s370
        %s377 = scalar_lea.vmem %s122, %s376 [#allocation4]
        %v378 = vld [vmem:[%s377] ss:$8 sm:$0x3]
        %s379 = sadd.s32 48, %s370
        %s380 = scalar_lea.vmem %s122, %s379 [#allocation4]
        %v381 = vld [vmem:[%s380] ss:$8 sm:$0x3]
        %s382 = scalar_lea.vmem %s140, 7 [#allocation7]
        %383 = vst.msk [vmem:[%s382] ss:$8 sm:$0x3] %vm165, %v372
        %384 = vst.msk [vmem:[%s382] ss:$8 sm:$0x0] %vm165, %v372
        %s385 = scalar_lea.vmem %s140, 23 [#allocation7]
        %386 = vst.msk [vmem:[%s385] ss:$8 sm:$0x3] %vm165, %v375
        %387 = vst.msk [vmem:[%s385] ss:$8 sm:$0x0] %vm165, %v375
        %s388 = scalar_lea.vmem %s140, 39 [#allocation7]
        %389 = vst.msk [vmem:[%s388] ss:$8 sm:$0x3] %vm165, %v378
        %390 = vst.msk [vmem:[%s388] ss:$8 sm:$0x0] %vm165, %v378
        %s391 = scalar_lea.vmem %s140, 55 [#allocation7]
        %392 = vst.msk [vmem:[%s391] ss:$8 sm:$0x3] %vm165, %v381
        %393 = vst.msk [vmem:[%s391] ss:$8 sm:$0x0] %vm165, %v381
        %s394 = sand.u32 %s57, 1
        %s395 = scalar_lea.sflag [#allocation6], %s394
        %s396 = sand.u32 %s57, 1
        %s397 = smul.addr %s396, 64
        %s398 = scalar_lea.vmem [#allocation7], %s397
        // Predicated region
        $region29: #{tpu_custom_call.1} parent=23 // pred_check
          %p399 = pneg %p67
        $region30: #{tpu_custom_call.1} parent=23 // pred_check_branch
          %401 = sbr.rel (%p399) target = $region32
        $region31: #{tpu_custom_call.1} parent=23 // pred_region
          %s402 = smul.u32 4, %s23
          %s404 = ssub.s32 1024, 1024
          %405 = vsyncadd %s395, %s404
          %s406 = smul.addr %s402, 2
          %s407 = smul.addr %s406, 128
          %s408 = scalar_lea.hbm %s2, %s407
          %s409 = sshll.u32 %s398, 4
          %s410 = int_to_ptr.vmem [resolvable:$true] %s409
          %415 = dma.vmem_to_hbm [thread:$0]  %s410, 1024, %s408, %s395, 256, 256, 16
        $region32: #{tpu_custom_call.1} parent=23 // pred_fallthru
          _
      $region24: #{tpu_custom_call.1} parent=5 // pred_fallthru
        _
      %p416 = scmp.le.s32.totalorder 2, %s18
      // Predicated region
      $region33: #{tpu_custom_call.1} parent=5 // pred_check
        %p417 = pneg %p416
      $region34: #{tpu_custom_call.1} parent=5 // pred_check_branch
        %419 = sbr.rel (%p417) target = $region36
      $region35: #{tpu_custom_call.1} parent=5 // pred_region
        %s420 = ssub.s32 %s18, 2
        // Predicated region
        $region37: #{tpu_custom_call.1} parent=35 // pred_check
          %p421 = pneg %p73
        $region38: #{tpu_custom_call.1} parent=35 // pred_check_branch
          %423 = sbr.rel (%p421) target = $region40
        $region39: #{tpu_custom_call.1} parent=35 // pred_region
          %s424 = sand.u32 %s58, 1
          %s425 = scalar_lea.sflag [#allocation6], %s424
          %s426 = sand.u32 %s58, 1
          %s427 = smul.addr %s426, 64
          %s428 = scalar_lea.vmem [#allocation7], %s427
          %429 = dma.done %s425, 1024
        $region40: #{tpu_custom_call.1} parent=35 // pred_fallthru
          _
      $region36: #{tpu_custom_call.1} parent=5 // pred_fallthru
        _
    $region6: #{tpu_custom_call.1} parent=1 // loop_footer
      %s22 = sadd.s32 1, %s18
    $region7: #{tpu_custom_call.1} parent=1 // loop_footer_branch
      %17 = sbr.rel target = $region3
    $region8: #{tpu_custom_call.1} parent=1 // loop_exit
      _
    %430 = vsyncpa [#allocation5], 1
    %s431 = scalar_lea.sflag [#allocation5], 1
    %432 = vsyncpa %s431, 1
    %433 = vsyncpa [#allocation6], 1
    %s434 = scalar_lea.sflag [#allocation6], 1
    %435 = vsyncpa %s434, 1

</llo_original>
